<compile_context>
chip_gen: v6e
topology: v6e:2x2x1
jax: 0.10.0
libtpu: 0.0.40
codegen_flags: <defaults>
</compile_context>

<pallas_src>
import math

import numpy as np
import jax
import jax.numpy as jnp
from jax.experimental import pallas as pl
from jax.experimental.pallas import tpu as pltpu


def _matmul_kernel(x_ref, w_ref, y_ref):
    # y_tile = x_tile @ W ; W block index is constant over the grid so it stays
    # resident in VMEM; x/y tiles are pipelined over the row grid.
    y_ref[...] = jnp.dot(x_ref[...], w_ref[...],
                         preferred_element_type=jnp.float32).astype(y_ref.dtype)


def _round_up(a, b):
    return ((a + b - 1) // b) * b


def _build_weight(p, lower, upper, sign_s, log_s):
    """O(ch^2) weight reconstruction, done once in the wrapper (off the hot path)."""
    ch = p.shape[0]
    f32 = jnp.float32
    eye = jnp.eye(ch, dtype=f32)
    L = jnp.tril(lower.astype(f32), -1) + eye
    U = jnp.triu(upper.astype(f32), 1) + jnp.diag(
        sign_s.reshape(-1).astype(f32) * jnp.exp(log_s.reshape(-1).astype(f32)))
    return jnp.dot(p.astype(f32), jnp.dot(L, U))


def _pick_block_rows(n_rows, width, itemsize, tm):
    """Largest row tile that keeps double-buffered tiles + weight well under the
    smallest scoped-VMEM default (v5e: 16 MiB)."""
    budget = 12 * 1024 * 1024
    w_bytes = 2 * width * width * itemsize          # weight (double-buffered)
    per_row = 2 * (width + width) * itemsize        # x tile + y tile, double-buffered
    cap = max(8, (budget - w_bytes) // per_row)
    blk = min(tm, int(cap), _round_up(n_rows, 8))
    blk = max(8, (blk // 8) * 8)
    return blk


def _tiled_matmul(x2, w, compute_dtype, tm):
    """x2: (M, width), w: (width, width) -> (M, width) via a 1-D pipelined grid."""
    M, width = x2.shape
    itemsize = jnp.dtype(compute_dtype).itemsize
    blk_m = _pick_block_rows(M, width, itemsize, tm)
    m_pad = _round_up(M, blk_m)
    if m_pad != M:
        x2 = jnp.pad(x2, ((0, m_pad - M), (0, 0)))

    y2 = pl.pallas_call(
        _matmul_kernel,
        out_shape=jax.ShapeDtypeStruct((m_pad, width), compute_dtype),
        grid=(m_pad // blk_m,),
        in_specs=[
            pl.BlockSpec((blk_m, width), lambda i: (i, 0)),   # x tile, pipelined over rows
            pl.BlockSpec((width, width), lambda i: (0, 0)),   # W: constant block, stays resident
        ],
        out_specs=pl.BlockSpec((blk_m, width), lambda i: (i, 0)),
        compiler_params=pltpu.CompilerParams(
            dimension_semantics=("parallel",),                # shard row tiles across TCs
        ),
    )(x2, w)
    return y2[:M]


def luconv_forward(x, p, lower, upper, sign_s, log_s, *, tm=1024):
    """Pallas implementation of LUConv.forward. Returns (y, log_det)."""
    orig_shape = x.shape
    orig_dtype = x.dtype
    ch = orig_shape[-1]

    w_f32 = _build_weight(p, lower, upper, sign_s, log_s)
    log_det = jnp.sum(log_s.astype(jnp.float32))

    # Keep bf16 data bf16 (kernel is HBM-bandwidth bound); otherwise compute in f32.
    compute_dtype = jnp.bfloat16 if orig_dtype == jnp.bfloat16 else jnp.float32
    x2 = x.reshape(-1, ch).astype(compute_dtype)
    M = x2.shape[0]

    # Lane-dense folding for small channel counts: group r rows into one row of
    # width r*ch (a multiple of 128) and use the block-diagonal weight kron(I_r, W).
    fold_width = (ch * 128) // math.gcd(ch, 128)
    use_fold = ch < 128 and fold_width <= 512

    if use_fold:
        r = fold_width // ch
        m_rows = _round_up(M, r)
        if m_rows != M:
            x2 = jnp.pad(x2, ((0, m_rows - M), (0, 0)))
        xf = x2.reshape(m_rows // r, fold_width)              # zero-copy row-major reshape
        w_blk = jnp.kron(jnp.eye(r, dtype=jnp.float32), w_f32).astype(compute_dtype)
        yf = _tiled_matmul(xf, w_blk, compute_dtype, tm)
        y2 = yf.reshape(m_rows, ch)[:M]
    else:
        # ch >= 128 is already lane-dense; rare awkward small ch (huge lcm) also
        # lands here and accepts masked stores rather than blowing up VMEM.
        y2 = _tiled_matmul(x2, w_f32.astype(compute_dtype), compute_dtype, tm)

    return y2.reshape(orig_shape).astype(orig_dtype), log_det


def init_luconv_params(key, ch):
    """Deterministic parameter construction mirroring LUConv.__init__."""
    # TODO(synk): torch.linalg.qr / torch.linalg.lu parameter init is one-time
    # setup done with jax.numpy / jax.scipy in the wrapper, not a Pallas kernel.
    w = jax.random.normal(key, (ch, ch), dtype=jnp.float32)
    q, _ = jnp.linalg.qr(w)
    p_mat, l_mat, u_mat = jax.scipy.linalg.lu(q)   # q = p @ l @ u
    s = jnp.diag(u_mat)
    sign_s = jnp.sign(s)
    log_s = jnp.log(jnp.abs(s))
    lower = l_mat                       # forward applies tril(., -1) + I
    upper = jnp.triu(u_mat, 1)          # forward re-adds the diagonal from sign_s*exp(log_s)
    return (p_mat.astype(jnp.float32), lower.astype(jnp.float32),
            upper.astype(jnp.float32), sign_s.astype(jnp.float32),
            log_s.astype(jnp.float32))


def _reference(x, p, lower, upper, sign_s, log_s):
    ch = p.shape[0]
    pn = np.asarray(p, np.float64)
    ln = np.tril(np.asarray(lower, np.float64), -1) + np.eye(ch)
    un = (np.triu(np.asarray(upper, np.float64), 1)
          + np.diag(np.asarray(sign_s, np.float64) * np.exp(np.asarray(log_s, np.float64))))
    w_ref = pn @ (ln @ un)
    return np.asarray(x, np.float64) @ w_ref, np.sum(np.asarray(log_s, np.float64))


if __name__ == "__main__":
    key = jax.random.PRNGKey(0)
    k_p1, k_p2, k_p3, k_x = jax.random.split(key, 4)
    fwd = jax.jit(luconv_forward, static_argnames=("tm",))

    # Case 1: small power-of-two channel count (lane-dense folded path, r=16).
    ch = 8
    batch, seq = 2, 16
    params_s = init_luconv_params(k_p1, ch)
    x = jax.random.normal(k_x, (batch, seq, ch), dtype=jnp.float32)
    y, log_det = fwd(x, *params_s)
    jax.block_until_ready(y); jax.block_until_ready(log_det)
    y_ref, ld_ref = _reference(x, *params_s)
    np.testing.assert_allclose(np.asarray(y), y_ref, rtol=2e-2, atol=2e-2)
    np.testing.assert_allclose(float(log_det), ld_ref, rtol=1e-5, atol=1e-5)
    assert y.dtype == x.dtype and y.shape == x.shape

    # Case 1b: bf16 input stays bf16 end-to-end.
    xb = x.astype(jnp.bfloat16)
    yb, _ = fwd(xb, *params_s)
    jax.block_until_ready(yb)
    np.testing.assert_allclose(np.asarray(yb, np.float32), y_ref, rtol=6e-2, atol=6e-2)
    assert yb.dtype == jnp.bfloat16

    # Case 2: wide channels (row-tiled path, already lane-dense).
    ch2 = 128
    params_b = init_luconv_params(k_p2, ch2)
    x2 = jax.random.normal(k_x, (batch, seq, ch2), dtype=jnp.float32)
    y2, log_det2 = fwd(x2, *params_b)
    jax.block_until_ready(y2)
    y2_ref, ld2_ref = _reference(x2, *params_b)
    np.testing.assert_allclose(np.asarray(y2), y2_ref, rtol=2e-2, atol=2e-2)
    np.testing.assert_allclose(float(log_det2), ld2_ref, rtol=1e-5, atol=1e-5)

    # Case 3: non-power-of-two small channels (folded path with width 384, r=8).
    ch3 = 48
    params_o = init_luconv_params(k_p3, ch3)
    x3 = jax.random.normal(k_x, (batch, 9, ch3), dtype=jnp.float32)  # M=18 not divisible by r
    y3, log_det3 = fwd(x3, *params_o)
    jax.block_until_ready(y3)
    y3_ref, ld3_ref = _reference(x3, *params_o)
    np.testing.assert_allclose(np.asarray(y3), y3_ref, rtol=2e-2, atol=2e-2)
    np.testing.assert_allclose(float(log_det3), ld3_ref, rtol=1e-5, atol=1e-5)

    print("KERNEL_OK")
</pallas_src>

<mosaic_0001>
module attributes {stable_mosaic.version = 11 : i64} {
  func.func @_matmul_kernel(%arg0: i32, %arg1: memref<8x128xf32, #tpu.memory_space<vmem>>, %arg2: memref<128x128xf32, #tpu.memory_space<vmem>>, %arg3: memref<8x128xf32, #tpu.memory_space<vmem>>) attributes {dimension_semantics = [#tpu.dimension_semantics<parallel>], iteration_bounds = array<i64: 1>, scalar_prefetch = 0 : i64, scratch_operands = 0 : i64, tpu.core_type = #tpu.core_type<tc>, window_params = [{transform_indices = @transform_0, window_bounds = array<i64: 8, 128>}, {pipeline_mode = #tpu.pipeline_mode<synchronous>, transform_indices = @transform_1, window_bounds = array<i64: 128, 128>}, {transform_indices = @transform_2, window_bounds = array<i64: 8, 128>}]} {
    %c0 = arith.constant 0 : index
    %c0_0 = arith.constant 0 : index
    %0 = vector.load %arg1[%c0, %c0_0] : memref<8x128xf32, #tpu.memory_space<vmem>>, vector<8x128xf32>
    %c0_1 = arith.constant 0 : index
    %c0_2 = arith.constant 0 : index
    %1 = vector.load %arg2[%c0_1, %c0_2] : memref<128x128xf32, #tpu.memory_space<vmem>>, vector<128x128xf32>
    %cst = arith.constant dense<0.000000e+00> : vector<8x128xf32>
    %2 = tpu.matmul %0, %1, %cst {dimension_numbers = #tpu.dot_dimension_numbers<[1], [0], [0], [1], [0, 0, 1, 1], [], []>} : vector<8x128xf32>, vector<128x128xf32>, vector<8x128xf32> -> vector<8x128xf32>
    %c0_3 = arith.constant 0 : index
    %c0_4 = arith.constant 0 : index
    %3 = vector.load %arg3[%c0_3, %c0_4] : memref<8x128xf32, #tpu.memory_space<vmem>>, vector<8x128xf32>
    tpu.vector_store %arg3[%c0_3, %c0_4], %2 {strides = array<i32>} : memref<8x128xf32, #tpu.memory_space<vmem>>, vector<8x128xf32>,
    return
  }
  func.func @transform_0(%arg0: i32) -> (i32, i32) {
    %c0_i32 = arith.constant 0 : i32
    %c0_i32_0 = arith.constant 0 : i32
    return %arg0, %c0_i32 : i32, i32
  }
  func.func @transform_1(%arg0: i32) -> (i32, i32) {
    %c0_i32 = arith.constant 0 : i32
    %c0_i32_0 = arith.constant 0 : i32
    %c0_i32_1 = arith.constant 0 : i32
    return %c0_i32, %c0_i32_0 : i32, i32
  }
  func.func @transform_2(%arg0: i32) -> (i32, i32) {
    %c0_i32 = arith.constant 0 : i32
    %c0_i32_0 = arith.constant 0 : i32
    return %arg0, %c0_i32 : i32, i32
  }
}

</mosaic_0001>

<llo_original>
// kernel: luconv_forward.1
$region0: #{luconv_forward.1}
  #allocation0 [shape = 'u32[]', space=smem, size = 0x4, offset = 0x4, fixed_abs, tag = 'smem constant byte address 0x4 - core index']
  #allocation1 [shape = 'u32[144,128]{1,0:T(1,128)}', space=vmem, size = 0x12000, scoped, tag = 'internal scratch']
  %s0 = inlined_call_operand.vmem [shape: f32[8,128], index: 0, kind: input, shape index: {}]
  %s1 = inlined_call_operand.vmem [shape: f32[128,128], index: 1, kind: input, shape index: {}]
  %s2 = inlined_call_operand.vmem [shape: f32[8,128], index: 2, kind: output, shape index: {}]
  %s3 = sld [smem:[#allocation0]]
  $region18: #{luconv_forward.1} parent=0
    _
  %s5 = ssub.s32 1, %s3
  %s6 = scalar_select 0, %s5, %s3
  // Predicated region
  $region2: #{luconv_forward.1} parent=0 // pred_check
    _
  $region3: #{luconv_forward.1} parent=0 // pred_check_branch
    %8 = sbr.rel (0) target = $region5
  $region4: #{luconv_forward.1} parent=0 // pred_region
    _
  $region5: #{luconv_forward.1} parent=0 // pred_fallthru
    _
  // Predicated region
  $region6: #{luconv_forward.1} parent=0 // pred_check
    _
  $region7: #{luconv_forward.1} parent=0 // pred_check_branch
    %10 = sbr.rel (0) target = $region9
  $region8: #{luconv_forward.1} parent=0 // pred_region
    _
  $region9: #{luconv_forward.1} parent=0 // pred_fallthru
    _
  %v11 = vld [vmem:[%s0] sm:$0xff]
  %v12 = vld [vmem:[%s1] sm:$0xff]
  %v13 = vld [vmem:[%s1 + $0x8] sm:$0xff]
  %v14 = vld [vmem:[%s1 + $0x10] sm:$0xff]
  %v15 = vld [vmem:[%s1 + $0x18] sm:$0xff]
  %v16 = vld [vmem:[%s1 + $0x20] sm:$0xff]
  %v17 = vld [vmem:[%s1 + $0x28] sm:$0xff]
  %v18 = vld [vmem:[%s1 + $0x30] sm:$0xff]
  %v19 = vld [vmem:[%s1 + $0x38] sm:$0xff]
  %v20 = vld [vmem:[%s1 + $0x40] sm:$0xff]
  %v21 = vld [vmem:[%s1 + $0x48] sm:$0xff]
  %v22 = vld [vmem:[%s1 + $0x50] sm:$0xff]
  %v23 = vld [vmem:[%s1 + $0x58] sm:$0xff]
  %v24 = vld [vmem:[%s1 + $0x60] sm:$0xff]
  %v25 = vld [vmem:[%s1 + $0x68] sm:$0xff]
  %v26 = vld [vmem:[%s1 + $0x70] sm:$0xff]
  %v27 = vld [vmem:[%s1 + $0x78] sm:$0xff]
  %28 = vmatprep.subr.mxu0 0.0
  %29 = vmatpush1.msra.mxu0 %v27
  %30 = vmatprep.subr.mxu0 0.0
  %31 = vmatpush1.msra.mxu0 %v26
  %32 = vmatprep.subr.mxu0 0.0
  %33 = vmatpush1.msra.mxu0 %v25
  %34 = vmatprep.subr.mxu0 0.0
  %35 = vmatpush1.msra.mxu0 %v24
  %36 = vmatprep.subr.mxu0 0.0
  %37 = vmatpush1.msra.mxu0 %v23
  %38 = vmatprep.subr.mxu0 0.0
  %39 = vmatpush1.msra.mxu0 %v22
  %40 = vmatprep.subr.mxu0 0.0
  %41 = vmatpush1.msra.mxu0 %v21
  %42 = vmatprep.subr.mxu0 0.0
  %43 = vmatpush1.msra.mxu0 %v20
  %44 = vmatprep.subr.mxu0 0.0
  %45 = vmatpush1.msra.mxu0 %v19
  %46 = vmatprep.subr.mxu0 0.0
  %47 = vmatpush1.msra.mxu0 %v18
  %48 = vmatprep.subr.mxu0 0.0
  %49 = vmatpush1.msra.mxu0 %v17
  %50 = vmatprep.subr.mxu0 0.0
  %51 = vmatpush1.msra.mxu0 %v16
  %52 = vmatprep.subr.mxu0 0.0
  %53 = vmatpush1.msra.mxu0 %v15
  %54 = vmatprep.subr.mxu0 0.0
  %55 = vmatpush1.msra.mxu0 %v14
  %56 = vmatprep.subr.mxu0 0.0
  %57 = vmatpush1.msra.mxu0 %v13
  %58 = vmatprep.subr.mxu0 0.0
  %59 = vmatpush1.msra.mxu0 %v12
  %60 = vmatprep.subr.mxu0 0.0
  %61 = vmatpush2.msra.mxu0 0.0
  %62 = vmatprep.subr.mxu0 0.0
  %63 = vmatpush2.msra.mxu0 0.0
  %64 = vmatprep.subr.mxu0 0.0
  %65 = vmatpush2.msra.mxu0 0.0
  %66 = vmatprep.subr.mxu0 0.0
  %67 = vmatpush2.msra.mxu0 0.0
  %68 = vmatprep.subr.mxu0 0.0
  %69 = vmatpush2.msra.mxu0 0.0
  %70 = vmatprep.subr.mxu0 0.0
  %71 = vmatpush2.msra.mxu0 0.0
  %72 = vmatprep.subr.mxu0 0.0
  %73 = vmatpush2.msra.mxu0 0.0
  %74 = vmatprep.subr.mxu0 0.0
  %75 = vmatpush2.msra.mxu0 0.0
  %76 = vmatprep.subr.mxu0 0.0
  %77 = vmatpush2.msra.mxu0 0.0
  %78 = vmatprep.subr.mxu0 0.0
  %79 = vmatpush2.msra.mxu0 0.0
  %80 = vmatprep.subr.mxu0 0.0
  %81 = vmatpush2.msra.mxu0 0.0
  %82 = vmatprep.subr.mxu0 0.0
  %83 = vmatpush2.msra.mxu0 0.0
  %84 = vmatprep.subr.mxu0 0.0
  %85 = vmatpush2.msra.mxu0 0.0
  %86 = vmatprep.subr.mxu0 0.0
  %87 = vmatpush2.msra.mxu0 0.0
  %88 = vmatprep.subr.mxu0 0.0
  %89 = vmatpush2.msra.mxu0 0.0
  %90 = vmatprep.subr.mxu0 0.0
  %91 = vmatpush2.msra.mxu0 0.0
  %92 = vmatprep.mubr.f32.mxu0 0.0
  %93 = vmatmul.mubr.f32.gmra.mxu0 %v11
  %v94 = vpop.f32.mrf.mxu0
  %v95 = vadd.f32 0.0, %v94
  %v96 = vpop.f32.mrf.mxu0
  %97 = vdwg.mxu0
  %98 = vst [vmem:[%s2] sm:$0xff] %v95
  // Predicated region
  $region10: #{luconv_forward.1} parent=0 // pred_check
    _
  $region11: #{luconv_forward.1} parent=0 // pred_check_branch
    %100 = sbr.rel (0) target = $region13
  $region12: #{luconv_forward.1} parent=0 // pred_region
    _
  $region13: #{luconv_forward.1} parent=0 // pred_fallthru
    _
  // Predicated region
  $region14: #{luconv_forward.1} parent=0 // pred_check
    _
  $region15: #{luconv_forward.1} parent=0 // pred_check_branch
    %102 = sbr.rel (0) target = $region17
  $region16: #{luconv_forward.1} parent=0 // pred_region
    _
  $region17: #{luconv_forward.1} parent=0 // pred_fallthru
    _

</llo_original>
